<compile_context>
chip_gen: v7x
topology: tpu7x:2x2x1
jax: 0.10.0
libtpu: 0.0.40
codegen_flags: <defaults>
</compile_context>

<pallas_src>
import jax
import jax.numpy as jnp
from jax.experimental import pallas as pl
from jax.experimental.pallas import tpu as pltpu


def _round_up(n, m):
    return ((n + m - 1) // m) * m


def _mlp_kernel(x_ref, w1_ref, b1_ref, w2_ref, b2_ref, out_ref, acc_ref):
    k = pl.program_id(1)

    @pl.when(k == 0)
    def _():
        acc_ref[...] = jnp.zeros_like(acc_ref)

    # fc1 partial product for this K tile; accumulate in f32 on the MXU.
    acc_ref[...] += jnp.dot(x_ref[...], w1_ref[...],
                            preferred_element_type=jnp.float32)

    @pl.when(k == pl.num_programs(1) - 1)
    def _():
        # bias + relu in f32
        h = jnp.maximum(acc_ref[...] + b1_ref[...], 0.0)
        # dropoout1 (p=0.5): identity in eval/inference mode.
        # fc2: operands in w2's dtype (bf16 path), f32 accumulation, f32 bias add.
        o = jnp.dot(h.astype(w2_ref.dtype), w2_ref[...],
                    preferred_element_type=jnp.float32)
        out_ref[...] = (o + b2_ref[...]).astype(out_ref.dtype)


def feature_classifier(x, w1, b1, w2, b2, *, use_bf16=True,
                       max_tile_b=256, max_tile_k=512):
    """Fused relu(x @ w1 + b1) @ w2 + b2 (dropout = identity, inference semantics).

    x: (B, in_dim); w1: (in_dim, hidden); b1: (hidden,); w2: (hidden, out); b2: (out,).
    """
    B, in_dim = x.shape
    assert w1.shape[0] == in_dim
    hidden = w1.shape[1]
    assert w2.shape[0] == hidden
    out_dim = w2.shape[1]

    # ---- tiling / padding (sublane=8, lane=128 alignment; lane-dense output) ----
    tile_b = min(max_tile_b, _round_up(B, 8))
    b_pad = _round_up(B, tile_b)

    if in_dim <= max_tile_k:
        tile_k, k_pad = in_dim, in_dim          # single K pass, block == full dim
    else:
        tile_k, k_pad = max_tile_k, _round_up(in_dim, max_tile_k)

    hid_pad = _round_up(hidden, 128)
    out_pad = _round_up(out_dim, 128)

    in_dtype = jnp.bfloat16 if use_bf16 else x.dtype

    xp = jnp.zeros((b_pad, k_pad), in_dtype).at[:B, :in_dim].set(x.astype(in_dtype))
    w1p = jnp.zeros((k_pad, hid_pad), in_dtype).at[:in_dim, :hidden].set(
        w1.astype(in_dtype))
    w2p = jnp.zeros((hid_pad, out_pad), in_dtype).at[:hidden, :out_dim].set(
        w2.astype(in_dtype))
    b1p = jnp.zeros((1, hid_pad), jnp.float32).at[0, :hidden].set(
        b1.astype(jnp.float32))
    b2p = jnp.zeros((1, out_pad), jnp.float32).at[0, :out_dim].set(
        b2.astype(jnp.float32))

    grid = (b_pad // tile_b, k_pad // tile_k)

    bytes_el = jnp.dtype(in_dtype).itemsize
    cost = pl.CostEstimate(
        flops=2 * b_pad * k_pad * hid_pad + 2 * b_pad * hid_pad * out_pad,
        transcendentals=0,
        bytes_accessed=(xp.size + w1p.size + w2p.size) * bytes_el
                       + (b1p.size + b2p.size) * 4 + b_pad * out_pad * 4,
    )

    out = pl.pallas_call(
        _mlp_kernel,
        out_shape=jax.ShapeDtypeStruct((b_pad, out_pad), jnp.float32),
        grid=grid,
        in_specs=[
            pl.BlockSpec((tile_b, tile_k), lambda i, k: (i, k)),    # x tile
            pl.BlockSpec((tile_k, hid_pad), lambda i, k: (k, 0)),   # w1 K-slab
            pl.BlockSpec((1, hid_pad), lambda i, k: (0, 0)),        # b1 (resident)
            pl.BlockSpec((hid_pad, out_pad), lambda i, k: (0, 0)),  # w2 (resident)
            pl.BlockSpec((1, out_pad), lambda i, k: (0, 0)),        # b2 (resident)
        ],
        out_specs=pl.BlockSpec((tile_b, out_pad), lambda i, k: (i, 0)),
        scratch_shapes=[pltpu.VMEM((tile_b, hid_pad), jnp.float32)],
        compiler_params=pltpu.CompilerParams(
            dimension_semantics=("parallel", "arbitrary"),
            vmem_limit_bytes=32 * 1024 * 1024,
        ),
        cost_estimate=cost,
    )(xp, w1p, b1p, w2p, b2p)

    return out[:B, :out_dim]


def init_params(key, in_dim, out_dim=2, hidden_dim=512):
    """Deterministic init mimicking nn.Linear's uniform(-1/sqrt(fan_in), 1/sqrt(fan_in))."""
    k1, k2, k3, k4 = jax.random.split(key, 4)
    bound1 = 1.0 / jnp.sqrt(in_dim)
    bound2 = 1.0 / jnp.sqrt(hidden_dim)
    # Stored already transposed relative to PyTorch's (out_features, in_features).
    w1 = jax.random.uniform(k1, (in_dim, hidden_dim), jnp.float32, -bound1, bound1)
    b1 = jax.random.uniform(k2, (hidden_dim,), jnp.float32, -bound1, bound1)
    w2 = jax.random.uniform(k3, (hidden_dim, out_dim), jnp.float32, -bound2, bound2)
    b2 = jax.random.uniform(k4, (out_dim,), jnp.float32, -bound2, bound2)
    return w1, b1, w2, b2


if __name__ == "__main__":
    key = jax.random.PRNGKey(0)
    kx, kp, kx2, kp2 = jax.random.split(key, 4)

    # ---- test 1: module defaults, f32 path (bit-for-bit vs jnp reference) ----
    B, in_dim, hidden_dim, out_dim = 8, 32, 512, 2
    x = jax.random.normal(kx, (B, in_dim), jnp.float32)
    w1, b1, w2, b2 = init_params(kp, in_dim, out_dim, hidden_dim)

    logits_f32 = feature_classifier(x, w1, b1, w2, b2, use_bf16=False)
    jax.block_until_ready(logits_f32)
    ref_f32 = jnp.maximum(x @ w1 + b1, 0.0) @ w2 + b2
    assert logits_f32.shape == (B, out_dim)
    assert jnp.allclose(logits_f32, ref_f32, atol=1e-4, rtol=1e-4)

    # ---- same shapes, bf16 MXU operands (compare vs bf16-cast f32-accum reference) ----
    logits_bf16 = feature_classifier(x, w1, b1, w2, b2, use_bf16=True)
    jax.block_until_ready(logits_bf16)
    h_ref = jnp.maximum(
        jnp.dot(x.astype(jnp.bfloat16), w1.astype(jnp.bfloat16),
                preferred_element_type=jnp.float32) + b1, 0.0)
    ref_bf16 = jnp.dot(h_ref.astype(jnp.bfloat16), w2.astype(jnp.bfloat16),
                       preferred_element_type=jnp.float32) + b2
    assert jnp.allclose(logits_bf16, ref_bf16, atol=2e-3, rtol=2e-3)

    # ---- test 2: exercises batch padding + K-tiling (B=20 not tile-aligned, in_dim>512) ----
    B2, in_dim2 = 20, 640
    x2 = jax.random.normal(kx2, (B2, in_dim2), jnp.float32)
    w1b, b1b, w2b, b2b = init_params(kp2, in_dim2, out_dim, hidden_dim)
    logits2 = feature_classifier(x2, w1b, b1b, w2b, b2b, use_bf16=False)
    jax.block_until_ready(logits2)
    ref2 = jnp.maximum(x2 @ w1b + b1b, 0.0) @ w2b + b2b
    assert logits2.shape == (B2, out_dim)
    assert jnp.allclose(logits2, ref2, atol=1e-4, rtol=1e-4)

    print("KERNEL_OK")
</pallas_src>

<mosaic_0001>
module attributes {stable_mosaic.version = 11 : i64} {
  func.func @_mlp_kernel(%arg0: i32, %arg1: i32, %arg2: memref<8x32xf32, #tpu.memory_space<vmem>>, %arg3: memref<32x512xf32, #tpu.memory_space<vmem>>, %arg4: memref<1x512xf32, #tpu.memory_space<vmem>>, %arg5: memref<512x128xf32, #tpu.memory_space<vmem>>, %arg6: memref<1x128xf32, #tpu.memory_space<vmem>>, %arg7: memref<8x128xf32, #tpu.memory_space<vmem>>, %arg8: memref<8x512xf32, #tpu.memory_space<vmem>>) attributes {dimension_semantics = [#tpu.dimension_semantics<parallel>, #tpu.dimension_semantics<arbitrary>], iteration_bounds = array<i64: 1, 1>, scalar_prefetch = 0 : i64, scratch_operands = 1 : i64, tpu.core_type = #tpu.core_type<tc>, window_params = [{transform_indices = @transform_0, window_bounds = array<i64: 8, 32>}, {transform_indices = @transform_1, window_bounds = array<i64: 32, 512>}, {pipeline_mode = #tpu.pipeline_mode<synchronous>, transform_indices = @transform_2, window_bounds = array<i64: 1, 512>}, {pipeline_mode = #tpu.pipeline_mode<synchronous>, transform_indices = @transform_3, window_bounds = array<i64: 512, 128>}, {pipeline_mode = #tpu.pipeline_mode<synchronous>, transform_indices = @transform_4, window_bounds = array<i64: 1, 128>}, {transform_indices = @transform_5, window_bounds = array<i64: 8, 128>}]} {
    %c0_i32 = arith.constant 0 : i32
    %0 = arith.cmpi eq, %arg1, %c0_i32 : i32
    %1 = arith.extui %0 : i1 to i32
    %c0_i32_0 = arith.constant 0 : i32
    %2 = arith.cmpi ne, %1, %c0_i32_0 : i32
    scf.if %2 {
      %cst_10 = arith.constant 0.000000e+00 : f32
      %12 = vector.broadcast %cst_10 : f32 to vector<8x512xf32>
      %c0_11 = arith.constant 0 : index
      %c0_12 = arith.constant 0 : index
      %13 = vector.load %arg8[%c0_11, %c0_12] : memref<8x512xf32, #tpu.memory_space<vmem>>, vector<8x512xf32>
      tpu.vector_store %arg8[%c0_11, %c0_12], %12 {strides = array<i32>} : memref<8x512xf32, #tpu.memory_space<vmem>>, vector<8x512xf32>,
    } else {
    }
    %c0 = arith.constant 0 : index
    %c0_1 = arith.constant 0 : index
    %3 = vector.load %arg8[%c0, %c0_1] : memref<8x512xf32, #tpu.memory_space<vmem>>, vector<8x512xf32>
    %c0_2 = arith.constant 0 : index
    %c0_3 = arith.constant 0 : index
    %4 = vector.load %arg2[%c0_2, %c0_3] : memref<8x32xf32, #tpu.memory_space<vmem>>, vector<8x32xf32>
    %c0_4 = arith.constant 0 : index
    %c0_5 = arith.constant 0 : index
    %5 = vector.load %arg3[%c0_4, %c0_5] : memref<32x512xf32, #tpu.memory_space<vmem>>, vector<32x512xf32>
    %cst = arith.constant dense<0.000000e+00> : vector<8x512xf32>
    %6 = tpu.matmul %4, %5, %cst {dimension_numbers = #tpu.dot_dimension_numbers<[1], [0], [0], [1], [0, 0, 1, 1], [], []>} : vector<8x32xf32>, vector<32x512xf32>, vector<8x512xf32> -> vector<8x512xf32>
    %7 = arith.addf %3, %6 : vector<8x512xf32>
    %c0_6 = arith.constant 0 : index
    %c0_7 = arith.constant 0 : index
    %8 = vector.load %arg8[%c0_6, %c0_7] : memref<8x512xf32, #tpu.memory_space<vmem>>, vector<8x512xf32>
    tpu.vector_store %arg8[%c0_6, %c0_7], %7 {strides = array<i32>} : memref<8x512xf32, #tpu.memory_space<vmem>>, vector<8x512xf32>,
    %c0_i32_8 = arith.constant 0 : i32
    %9 = arith.cmpi eq, %arg1, %c0_i32_8 : i32
    %10 = arith.extui %9 : i1 to i32
    %c0_i32_9 = arith.constant 0 : i32
    %11 = arith.cmpi ne, %10, %c0_i32_9 : i32
    scf.if %11 {
      %c0_10 = arith.constant 0 : index
      %c0_11 = arith.constant 0 : index
      %12 = vector.load %arg8[%c0_10, %c0_11] : memref<8x512xf32, #tpu.memory_space<vmem>>, vector<8x512xf32>
      %c0_12 = arith.constant 0 : index
      %c0_13 = arith.constant 0 : index
      %13 = vector.load %arg4[%c0_12, %c0_13] : memref<1x512xf32, #tpu.memory_space<vmem>>, vector<1x512xf32>
      %14 = vector.broadcast %13 : vector<1x512xf32> to vector<8x512xf32>
      %15 = arith.addf %12, %14 : vector<8x512xf32>
      %cst_14 = arith.constant 0.000000e+00 : f32
      %16 = vector.broadcast %cst_14 : f32 to vector<8x512xf32>
      %17 = arith.maximumf %15, %16 : vector<8x512xf32>
      %c0_15 = arith.constant 0 : index
      %c0_16 = arith.constant 0 : index
      %18 = vector.load %arg5[%c0_15, %c0_16] : memref<512x128xf32, #tpu.memory_space<vmem>>, vector<512x128xf32>
      %cst_17 = arith.constant dense<0.000000e+00> : vector<8x128xf32>
      %19 = tpu.matmul %17, %18, %cst_17 {dimension_numbers = #tpu.dot_dimension_numbers<[1], [0], [0], [1], [0, 0, 1, 1], [], []>} : vector<8x512xf32>, vector<512x128xf32>, vector<8x128xf32> -> vector<8x128xf32>
      %c0_18 = arith.constant 0 : index
      %c0_19 = arith.constant 0 : index
      %20 = vector.load %arg6[%c0_18, %c0_19] : memref<1x128xf32, #tpu.memory_space<vmem>>, vector<1x128xf32>
      %21 = vector.broadcast %20 : vector<1x128xf32> to vector<8x128xf32>
      %22 = arith.addf %19, %21 : vector<8x128xf32>
      %c0_20 = arith.constant 0 : index
      %c0_21 = arith.constant 0 : index
      %23 = vector.load %arg7[%c0_20, %c0_21] : memref<8x128xf32, #tpu.memory_space<vmem>>, vector<8x128xf32>
      tpu.vector_store %arg7[%c0_20, %c0_21], %22 {strides = array<i32>} : memref<8x128xf32, #tpu.memory_space<vmem>>, vector<8x128xf32>,
    } else {
    }
    return
  }
  func.func @transform_0(%arg0: i32, %arg1: i32) -> (i32, i32) {
    %c0_i32 = arith.constant 0 : i32
    return %arg0, %arg1 : i32, i32
  }
  func.func @transform_1(%arg0: i32, %arg1: i32) -> (i32, i32) {
    %c0_i32 = arith.constant 0 : i32
    %c0_i32_0 = arith.constant 0 : i32
    return %arg1, %c0_i32 : i32, i32
  }
  func.func @transform_2(%arg0: i32, %arg1: i32) -> (i32, i32) {
    %c0_i32 = arith.constant 0 : i32
    %c0_i32_0 = arith.constant 0 : i32
    %c0_i32_1 = arith.constant 0 : i32
    return %c0_i32, %c0_i32_0 : i32, i32
  }
  func.func @transform_3(%arg0: i32, %arg1: i32) -> (i32, i32) {
    %c0_i32 = arith.constant 0 : i32
    %c0_i32_0 = arith.constant 0 : i32
    %c0_i32_1 = arith.constant 0 : i32
    return %c0_i32, %c0_i32_0 : i32, i32
  }
  func.func @transform_4(%arg0: i32, %arg1: i32) -> (i32, i32) {
    %c0_i32 = arith.constant 0 : i32
    %c0_i32_0 = arith.constant 0 : i32
    %c0_i32_1 = arith.constant 0 : i32
    return %c0_i32, %c0_i32_0 : i32, i32
  }
  func.func @transform_5(%arg0: i32, %arg1: i32) -> (i32, i32) {
    %c0_i32 = arith.constant 0 : i32
    %c0_i32_0 = arith.constant 0 : i32
    return %arg0, %c0_i32 : i32, i32
  }
}

</mosaic_0001>

<llo_original>
// kernel: tpu_custom_call.1
$region0: #{tpu_custom_call.1}
  #allocation0 [shape = 'u32[]', space=smem, size = 0x4, offset = 0x4, fixed_abs, tag = 'smem constant byte address 0x4 - core index']
  #allocation1 [shape = 'u32[144,128]{1,0:T(1,128)}', space=vmem, size = 0x12000, scoped, tag = 'internal scratch']
  #allocation2 [shape = 'f32[8,512]{1,0:T(8,128)}', space=vmem, size = 0x4000, scoped, tag = 'scratch operand']
  %s0 = inlined_call_operand.hbm [shape: f32[8,32], index: 0, kind: input, shape index: {}]
  %s1 = inlined_call_operand.hbm [shape: f32[32,512], index: 1, kind: input, shape index: {}]
  %s2 = inlined_call_operand.vmem [shape: f32[1,512], index: 2, kind: input, shape index: {}]
  %s3 = inlined_call_operand.hbm [shape: f32[512,128], index: 3, kind: input, shape index: {}]
  %s4 = inlined_call_operand.vmem [shape: f32[1,128], index: 4, kind: input, shape index: {}]
  %s5 = inlined_call_operand.hbm [shape: f32[8,128], index: 5, kind: output, shape index: {}]
  %s6 = sld [smem:[#allocation0]]
  $region50: #{tpu_custom_call.1} parent=0
    _
  %s8 = ssub.s32 1, %s6
  %s9 = scalar_select 0, %s8, %s6
  $region1: #{tpu_custom_call.1} parent=0
    #allocation3 [shape = 'u8[4096]{0}', space=vmem, size = 0x1000, scoped, tag = 'input window, operand 0, single buffered']
    #allocation4 [shape = 's32[1]{0}', space=sflag, size = 0x4, scoped, tag = 'scoped memory for tpu_custom_call.1']
    #allocation5 [shape = 's32[1]{0}', space=sflag, size = 0x4, scoped, tag = 'scoped memory for tpu_custom_call.1']
    #allocation6 [shape = 'u8[65536]{0}', space=vmem, size = 0x10000, scoped, tag = 'input window, operand 1, single buffered']
    #allocation7 [shape = 's32[1]{0}', space=sflag, size = 0x4, scoped, tag = 'scoped memory for tpu_custom_call.1']
    #allocation8 [shape = 'u8[262144]{0}', space=vmem, size = 0x40000, scoped, tag = 'input window, operand 3, single buffered']
    #allocation9 [shape = 'u8[4096]{0}', space=vmem, size = 0x1000, scoped, tag = 'output window, operand 0, single buffered']
    %10 = vsyncpa [#allocation4], 0
    %11 = vsyncpa [#allocation7], 0
    %12 = vsyncpa [#allocation5], 0
    // Predicated region
    $region2: #{tpu_custom_call.1} parent=1 // pred_check
      _
    $region3: #{tpu_custom_call.1} parent=1 // pred_check_branch
      %14 = sbr.rel (0) target = $region5
    $region4: #{tpu_custom_call.1} parent=1 // pred_region
      %s16 = ssub.s32 128, 128
      %17 = vsyncadd [#allocation4], %s16
      %s19 = sshll.u32 [#allocation3], 4
      %s20 = int_to_ptr.vmem [resolvable:$true] %s19
      %22 = dma.hbm_to_vmem [thread:$0]  %s0, 128, %s20, [#allocation4]
    $region5: #{tpu_custom_call.1} parent=1 // pred_fallthru
      _
    // Predicated region
    $region6: #{tpu_custom_call.1} parent=1 // pred_check
      _
    $region7: #{tpu_custom_call.1} parent=1 // pred_check_branch
      %24 = sbr.rel (0) target = $region9
    $region8: #{tpu_custom_call.1} parent=1 // pred_region
      %s26 = ssub.s32 2048, 2048
      %27 = vsyncadd [#allocation7], %s26
      %s28 = sshll.u32 [#allocation6], 4
      %s29 = int_to_ptr.vmem [resolvable:$true] %s28
      %34 = dma.hbm_to_vmem [thread:$0]  %s1, 2048, %s29, [#allocation7], 512, 512, 32
    $region9: #{tpu_custom_call.1} parent=1 // pred_fallthru
      _
    // Predicated region
    $region10: #{tpu_custom_call.1} parent=1 // pred_check
      _
    $region11: #{tpu_custom_call.1} parent=1 // pred_check_branch
      %36 = sbr.rel (0) target = $region13
    $region12: #{tpu_custom_call.1} parent=1 // pred_region
      _
    $region13: #{tpu_custom_call.1} parent=1 // pred_fallthru
      _
    // Predicated region
    $region14: #{tpu_custom_call.1} parent=1 // pred_check
      _
    $region15: #{tpu_custom_call.1} parent=1 // pred_check_branch
      %38 = sbr.rel (0) target = $region17
    $region16: #{tpu_custom_call.1} parent=1 // pred_region
      %s40 = ssub.s32 8192, 8192
      %41 = vsyncadd [#allocation7], %s40
      %s42 = sshll.u32 [#allocation8], 4
      %s43 = int_to_ptr.vmem [resolvable:$true] %s42
      %48 = dma.hbm_to_vmem [thread:$0]  %s3, 8192, %s43, [#allocation7], 128, 128, 8
    $region17: #{tpu_custom_call.1} parent=1 // pred_fallthru
      _
    // Predicated region
    $region18: #{tpu_custom_call.1} parent=1 // pred_check
      _
    $region19: #{tpu_custom_call.1} parent=1 // pred_check_branch
      %50 = sbr.rel (0) target = $region21
    $region20: #{tpu_custom_call.1} parent=1 // pred_region
      _
    $region21: #{tpu_custom_call.1} parent=1 // pred_fallthru
      _
    // Predicated region
    $region22: #{tpu_custom_call.1} parent=1 // pred_check
      _
    $region23: #{tpu_custom_call.1} parent=1 // pred_check_branch
      %52 = sbr.rel (0) target = $region25
    $region24: #{tpu_custom_call.1} parent=1 // pred_region
      %53 = dma.done [#allocation4], 128
    $region25: #{tpu_custom_call.1} parent=1 // pred_fallthru
      _
    // Predicated region
    $region26: #{tpu_custom_call.1} parent=1 // pred_check
      _
    $region27: #{tpu_custom_call.1} parent=1 // pred_check_branch
      %55 = sbr.rel (0) target = $region29
    $region28: #{tpu_custom_call.1} parent=1 // pred_region
      %56 = dma.done [#allocation7], 2048
    $region29: #{tpu_custom_call.1} parent=1 // pred_fallthru
      _
    // Predicated region
    $region30: #{tpu_custom_call.1} parent=1 // pred_check
      _
    $region31: #{tpu_custom_call.1} parent=1 // pred_check_branch
      %58 = sbr.rel (0) target = $region33
    $region32: #{tpu_custom_call.1} parent=1 // pred_region
      %59 = dma.done [#allocation7], 8192
    $region33: #{tpu_custom_call.1} parent=1 // pred_fallthru
      _
    %p60 = scmp.eq.s32.totalorder 0, 0
    // Predicated region
    $region34: #{tpu_custom_call.1} parent=1 // pred_check
      %p61 = pneg %p60
    $region35: #{tpu_custom_call.1} parent=1 // pred_check_branch
      %63 = sbr.rel (%p61) target = $region37
    $region36: #{tpu_custom_call.1} parent=1 // pred_region
      %64 = vst [vmem:[#allocation2] sm:$0xff] 0.0
      %65 = vst [vmem:[#allocation2 + $0x8] sm:$0xff] 0.0
      %66 = vst [vmem:[#allocation2 + $0x10] sm:$0xff] 0.0
      %67 = vst [vmem:[#allocation2 + $0x18] sm:$0xff] 0.0
    $region37: #{tpu_custom_call.1} parent=1 // pred_fallthru
      _
    %v68 = vld [vmem:[#allocation2] sm:$0xff]
    %v69 = vld [vmem:[#allocation2 + $0x8] sm:$0xff]
    %v70 = vld [vmem:[#allocation2 + $0x10] sm:$0xff]
    %v71 = vld [vmem:[#allocation2 + $0x18] sm:$0xff]
    %v72 = vld [vmem:[#allocation3] sm:$0xff]
    %v73 = vld [vmem:[#allocation6] sm:$0xff]
    %v74 = vld [vmem:[#allocation6 + $0x8] sm:$0xff]
    %v75 = vld [vmem:[#allocation6 + $0x10] sm:$0xff]
    %v76 = vld [vmem:[#allocation6 + $0x18] sm:$0xff]
    %v77 = vld [vmem:[#allocation6 + $0x20] sm:$0xff]
    %v78 = vld [vmem:[#allocation6 + $0x28] sm:$0xff]
    %v79 = vld [vmem:[#allocation6 + $0x30] sm:$0xff]
    %v80 = vld [vmem:[#allocation6 + $0x38] sm:$0xff]
    %v81 = vld [vmem:[#allocation6 + $0x40] sm:$0xff]
    %v82 = vld [vmem:[#allocation6 + $0x48] sm:$0xff]
    %v83 = vld [vmem:[#allocation6 + $0x50] sm:$0xff]
    %v84 = vld [vmem:[#allocation6 + $0x58] sm:$0xff]
    %v85 = vld [vmem:[#allocation6 + $0x60] sm:$0xff]
    %v86 = vld [vmem:[#allocation6 + $0x68] sm:$0xff]
    %v87 = vld [vmem:[#allocation6 + $0x70] sm:$0xff]
    %v88 = vld [vmem:[#allocation6 + $0x78] sm:$0xff]
    %vm89 = vcmask 261120
    %v91 = vsel %vm89, %v72, 0
    %93 = vmatprep.subr.mxu0 %v74
    %94 = vmatpush1.msra.mxu0 %v73
    %95 = vmatprep.subr.mxu0 %v78
    %96 = vmatpush1.msra.mxu0 %v77
    %97 = vmatprep.subr.mxu0 %v82
    %98 = vmatpush1.msra.mxu0 %v81
    %99 = vmatprep.subr.mxu0 %v86
    %100 = vmatpush1.msra.mxu0 %v85
    %101 = vmatprep.subr.mxu0 0.0
    %102 = vmatpush1.msra.mxu0 0.0
    %103 = vmatprep.subr.mxu0 0.0
    %104 = vmatpush1.msra.mxu0 0.0
    %105 = vmatprep.subr.mxu0 0.0
    %106 = vmatpush1.msra.mxu0 0.0
    %107 = vmatprep.subr.mxu0 0.0
    %108 = vmatpush1.msra.mxu0 0.0
    %109 = vmatprep.subr.mxu0 0.0
    %110 = vmatpush1.msra.mxu0 0.0
    %111 = vmatprep.subr.mxu0 0.0
    %112 = vmatpush1.msra.mxu0 0.0
    %113 = vmatprep.subr.mxu0 0.0
    %114 = vmatpush1.msra.mxu0 0.0
    %115 = vmatprep.subr.mxu0 0.0
    %116 = vmatpush1.msra.mxu0 0.0
    %117 = vmatprep.subr.mxu0 0.0
    %118 = vmatpush1.msra.mxu0 0.0
    %119 = vmatprep.subr.mxu0 0.0
    %120 = vmatpush1.msra.mxu0 0.0
    %121 = vmatprep.subr.mxu0 0.0
    %122 = vmatpush1.msra.mxu0 0.0
    %123 = vmatprep.subr.mxu0 0.0
    %124 = vmatpush1.msra.mxu0 0.0
    %125 = vmatprep.subr.mxu0 0.0
    %126 = vmatpush1.msra.mxu0 0.0
    %127 = vmatprep.subr.mxu0 0.0
    %128 = vmatpush1.msra.mxu0 0.0
    %129 = vmatprep.subr.mxu0 0.0
    %130 = vmatpush1.msra.mxu0 0.0
    %131 = vmatprep.subr.mxu0 0.0
    %132 = vmatpush1.msra.mxu0 0.0
    %133 = vmatprep.subr.mxu0 0.0
    %134 = vmatpush1.msra.mxu0 0.0
    %135 = vmatprep.subr.mxu0 0.0
    %136 = vmatpush1.msra.mxu0 0.0
    %137 = vmatprep.subr.mxu0 0.0
    %138 = vmatpush1.msra.mxu0 0.0
    %139 = vmatprep.subr.mxu0 0.0
    %140 = vmatpush1.msra.mxu0 0.0
    %141 = vmatprep.subr.mxu0 0.0
    %142 = vmatpush1.msra.mxu0 0.0
    %143 = vmatprep.subr.mxu0 0.0
    %144 = vmatpush1.msra.mxu0 0.0
    %145 = vmatprep.subr.mxu0 0.0
    %146 = vmatpush1.msra.mxu0 0.0
    %147 = vmatprep.subr.mxu0 0.0
    %148 = vmatpush1.msra.mxu0 0.0
    %149 = vmatprep.subr.mxu0 0.0
    %150 = vmatpush1.msra.mxu0 0.0
    %151 = vmatprep.subr.mxu0 0.0
    %152 = vmatpush1.msra.mxu0 0.0
    %153 = vmatprep.subr.mxu0 0.0
    %154 = vmatpush1.msra.mxu0 0.0
    %155 = vmatprep.subr.mxu0 0.0
    %156 = vmatpush1.msra.mxu0 0.0
    %157 = vmatprep.mubr.f32.mxu0 0.0
    %158 = vmatmul.mubr.f32.gmra.mrb[0].mxu0 %v91
    %v159 = vpop.f32.mrb[0].mxu0
    %v160 = vadd.f32 0.0, %v159
    %v161 = vpop.f32.mrb[0].mxu0
    %v162 = vadd.f32 0.0, %v161
    %163 = vdwg.mxu0
    %164 = vmatprep.subr.mxu0 %v76
    %165 = vmatpush1.msra.mxu0 %v75
    %166 = vmatprep.subr.mxu0 %v80
    %167 = vmatpush1.msra.mxu0 %v79
    %168 = vmatprep.subr.mxu0 %v84
    %169 = vmatpush1.msra.mxu0 %v83
    %170 = vmatprep.subr.mxu0 %v88
    %171 = vmatpush1.msra.mxu0 %v87
    %172 = vmatprep.subr.mxu0 0.0
    %173 = vmatpush1.msra.mxu0 0.0
    %174 = vmatprep.subr.mxu0 0.0
    %175 = vmatpush1.msra.mxu0 0.0
    %176 = vmatprep.subr.mxu0 0.0
    %177 = vmatpush1.msra.mxu0 0.0
    %178 = vmatprep.subr.mxu0 0.0
    %179 = vmatpush1.msra.mxu0 0.0
    %180 = vmatprep.subr.mxu0 0.0
    %181 = vmatpush1.msra.mxu0 0.0
    %182 = vmatprep.subr.mxu0 0.0
    %183 = vmatpush1.msra.mxu0 0.0
    %184 = vmatprep.subr.mxu0 0.0
    %185 = vmatpush1.msra.mxu0 0.0
    %186 = vmatprep.subr.mxu0 0.0
    %187 = vmatpush1.msra.mxu0 0.0
    %188 = vmatprep.subr.mxu0 0.0
    %189 = vmatpush1.msra.mxu0 0.0
    %190 = vmatprep.subr.mxu0 0.0
    %191 = vmatpush1.msra.mxu0 0.0
    %192 = vmatprep.subr.mxu0 0.0
    %193 = vmatpush1.msra.mxu0 0.0
    %194 = vmatprep.subr.mxu0 0.0
    %195 = vmatpush1.msra.mxu0 0.0
    %196 = vmatprep.subr.mxu0 0.0
    %197 = vmatpush1.msra.mxu0 0.0
    %198 = vmatprep.subr.mxu0 0.0
    %199 = vmatpush1.msra.mxu0 0.0
    %200 = vmatprep.subr.mxu0 0.0
    %201 = vmatpush1.msra.mxu0 0.0
    %202 = vmatprep.subr.mxu0 0.0
    %203 = vmatpush1.msra.mxu0 0.0
    %204 = vmatprep.subr.mxu0 0.0
    %205 = vmatpush1.msra.mxu0 0.0
    %206 = vmatprep.subr.mxu0 0.0
    %207 = vmatpush1.msra.mxu0 0.0
    %208 = vmatprep.subr.mxu0 0.0
    %209 = vmatpush1.msra.mxu0 0.0
    %210 = vmatprep.subr.mxu0 0.0
    %211 = vmatpush1.msra.mxu0 0.0
    %212 = vmatprep.subr.mxu0 0.0
    %213 = vmatpush1.msra.mxu0 0.0
    %214 = vmatprep.subr.mxu0 0.0
    %215 = vmatpush1.msra.mxu0 0.0
    %216 = vmatprep.subr.mxu0 0.0
    %217 = vmatpush1.msra.mxu0 0.0
    %218 = vmatprep.subr.mxu0 0.0
    %219 = vmatpush1.msra.mxu0 0.0
    %220 = vmatprep.subr.mxu0 0.0
    %221 = vmatpush1.msra.mxu0 0.0
    %222 = vmatprep.subr.mxu0 0.0
    %223 = vmatpush1.msra.mxu0 0.0
    %224 = vmatprep.subr.mxu0 0.0
    %225 = vmatpush1.msra.mxu0 0.0
    %226 = vmatprep.subr.mxu0 0.0
    %227 = vmatpush1.msra.mxu0 0.0
    %228 = vmatprep.mubr.f32.mxu0 0.0
    %229 = vmatmul.mubr.f32.gmra.mrb[0].mxu0 %v91
    %v230 = vpop.f32.mrb[0].mxu0
    %v231 = vadd.f32 0.0, %v230
    %v232 = vpop.f32.mrb[0].mxu0
    %v233 = vadd.f32 0.0, %v232
    %234 = vdwg.mxu0
    %v235 = vadd.f32 %v68, %v160
    %v236 = vadd.f32 %v69, %v162
    %v237 = vadd.f32 %v70, %v231
    %v238 = vadd.f32 %v71, %v233
    %239 = vst [vmem:[#allocation2] sm:$0xff] %v235
    %240 = vst [vmem:[#allocation2 + $0x8] sm:$0xff] %v236
    %241 = vst [vmem:[#allocation2 + $0x10] sm:$0xff] %v237
    %242 = vst [vmem:[#allocation2 + $0x18] sm:$0xff] %v238
    // Predicated region
    $region38: #{tpu_custom_call.1} parent=1 // pred_check
      %p243 = pneg %p60
    $region39: #{tpu_custom_call.1} parent=1 // pred_check_branch
      %245 = sbr.rel (%p243) target = $region41
    $region40: #{tpu_custom_call.1} parent=1 // pred_region
      %v246 = vld [vmem:[#allocation2] sm:$0xff]
      %v247 = vld [vmem:[#allocation2 + $0x8] sm:$0xff]
      %v248 = vld [vmem:[#allocation2 + $0x10] sm:$0xff]
      %v249 = vld [vmem:[#allocation2 + $0x18] sm:$0xff]
      %v250 = vld [vmem:[%s2] sm:$0xf]
      %v252 = vlaneseq
      %v253 = vshrl.u32 %v252, 7
      %v254 = vsub.s32 0, %v253
      %v255 = vrot.slane %v250, %v254
      %v256 = vlaneseq
      %v257 = vshrl.u32 %v256, 7
      %v258 = vsub.s32 1, %v257
      %v259 = vrot.slane %v250, %v258
      %v260 = vlaneseq
      %v261 = vshrl.u32 %v260, 7
      %v262 = vsub.s32 2, %v261
      %v263 = vrot.slane %v250, %v262
      %v264 = vlaneseq
      %v265 = vshrl.u32 %v264, 7
      %v266 = vsub.s32 3, %v265
      %v267 = vrot.slane %v250, %v266
      %v272 = vadd.f32 %v246, %v255
      %v273 = vadd.f32 %v247, %v259
      %v274 = vadd.f32 %v248, %v263
      %v275 = vadd.f32 %v249, %v267
      %v276 = vmax.f32 %v272, 0.0
      %v277 = vmax.f32 %v273, 0.0
      %v278 = vmax.f32 %v274, 0.0
      %v279 = vmax.f32 %v275, 0.0
      %v280 = vld [vmem:[#allocation8] sm:$0xff]
      %v281 = vld [vmem:[#allocation8 + $0x8] sm:$0xff]
      %v282 = vld [vmem:[#allocation8 + $0x10] sm:$0xff]
      %v283 = vld [vmem:[#allocation8 + $0x18] sm:$0xff]
      %v284 = vld [vmem:[#allocation8 + $0x20] sm:$0xff]
      %v285 = vld [vmem:[#allocation8 + $0x28] sm:$0xff]
      %v286 = vld [vmem:[#allocation8 + $0x30] sm:$0xff]
      %v287 = vld [vmem:[#allocation8 + $0x38] sm:$0xff]
      %v288 = vld [vmem:[#allocation8 + $0x40] sm:$0xff]
      %v289 = vld [vmem:[#allocation8 + $0x48] sm:$0xff]
      %v290 = vld [vmem:[#allocation8 + $0x50] sm:$0xff]
      %v291 = vld [vmem:[#allocation8 + $0x58] sm:$0xff]
      %v292 = vld [vmem:[#allocation8 + $0x60] sm:$0xff]
      %v293 = vld [vmem:[#allocation8 + $0x68] sm:$0xff]
      %v294 = vld [vmem:[#allocation8 + $0x70] sm:$0xff]
      %v295 = vld [vmem:[#allocation8 + $0x78] sm:$0xff]
      %v296 = vld [vmem:[#allocation8 + $0x80] sm:$0xff]
      %v297 = vld [vmem:[#allocation8 + $0x88] sm:$0xff]
      %v298 = vld [vmem:[#allocation8 + $0x90] sm:$0xff]
      %v299 = vld [vmem:[#allocation8 + $0x98] sm:$0xff]
      %v300 = vld [vmem:[#allocation8 + $0xa0] sm:$0xff]
      %v301 = vld [vmem:[#allocation8 + $0xa8] sm:$0xff]
      %v302 = vld [vmem:[#allocation8 + $0xb0] sm:$0xff]
      %v303 = vld [vmem:[#allocation8 + $0xb8] sm:$0xff]
      %v304 = vld [vmem:[#allocation8 + $0xc0] sm:$0xff]
      %v305 = vld [vmem:[#allocation8 + $0xc8] sm:$0xff]
      %v306 = vld [vmem:[#allocation8 + $0xd0] sm:$0xff]
      %v307 = vld [vmem:[#allocation8 + $0xd8] sm:$0xff]
      %v308 = vld [vmem:[#allocation8 + $0xe0] sm:$0xff]
      %v309 = vld [vmem:[#allocation8 + $0xe8] sm:$0xff]
      %v310 = vld [vmem:[#allocation8 + $0xf0] sm:$0xff]
      %v311 = vld [vmem:[#allocation8 + $0xf8] sm:$0xff]
      %v312 = vld [vmem:[#allocation8 + $0x100] sm:$0xff]
      %v313 = vld [vmem:[#allocation8 + $0x108] sm:$0xff]
      %v314 = vld [vmem:[#allocation8 + $0x110] sm:$0xff]
      %v315 = vld [vmem:[#allocation8 + $0x118] sm:$0xff]
      %v316 = vld [vmem:[#allocation8 + $0x120] sm:$0xff]
      %v317 = vld [vmem:[#allocation8 + $0x128] sm:$0xff]
      %v318 = vld [vmem:[#allocation8 + $0x130] sm:$0xff]
      %v319 = vld [vmem:[#allocation8 + $0x138] sm:$0xff]
      %v320 = vld [vmem:[#allocation8 + $0x140] sm:$0xff]
      %v321 = vld [vmem:[#allocation8 + $0x148] sm:$0xff]
      %v322 = vld [vmem:[#allocation8 + $0x150] sm:$0xff]
      %v323 = vld [vmem:[#allocation8 + $0x158] sm:$0xff]
      %v324 = vld [vmem:[#allocation8 + $0x160] sm:$0xff]
      %v325 = vld [vmem:[#allocation8 + $0x168] sm:$0xff]
      %v326 = vld [vmem:[#allocation8 + $0x170] sm:$0xff]
      %v327 = vld [vmem:[#allocation8 + $0x178] sm:$0xff]
      %v328 = vld [vmem:[#allocation8 + $0x180] sm:$0xff]
      %v329 = vld [vmem:[#allocation8 + $0x188] sm:$0xff]
      %v330 = vld [vmem:[#allocation8 + $0x190] sm:$0xff]
      %v331 = vld [vmem:[#allocation8 + $0x198] sm:$0xff]
      %v332 = vld [vmem:[#allocation8 + $0x1a0] sm:$0xff]
      %v333 = vld [vmem:[#allocation8 + $0x1a8] sm:$0xff]
      %v334 = vld [vmem:[#allocation8 + $0x1b0] sm:$0xff]
      %v335 = vld [vmem:[#allocation8 + $0x1b8] sm:$0xff]
      %v336 = vld [vmem:[#allocation8 + $0x1c0] sm:$0xff]
      %v337 = vld [vmem:[#allocation8 + $0x1c8] sm:$0xff]
      %v338 = vld [vmem:[#allocation8 + $0x1d0] sm:$0xff]
      %v339 = vld [vmem:[#allocation8 + $0x1d8] sm:$0xff]
      %v340 = vld [vmem:[#allocation8 + $0x1e0] sm:$0xff]
      %v341 = vld [vmem:[#allocation8 + $0x1e8] sm:$0xff]
      %v342 = vld [vmem:[#allocation8 + $0x1f0] sm:$0xff]
      %v343 = vld [vmem:[#allocation8 + $0x1f8] sm:$0xff]
      %v344 = vld [vmem:[%s4] sm:$0x1]
      %v346 = vlaneseq
      %v347 = vshrl.u32 %v346, 7
      %v348 = vsub.s32 0, %v347
      %v349 = vrot.slane %v344, %v348
      %351 = vmatprep.subr.mxu0 0.0
      %352 = vmatpush1.msra.mxu0 %v280
      %353 = vmatprep.subr.mxu0 0.0
      %354 = vmatpush1.msra.mxu0 %v281
      %355 = vmatprep.subr.mxu0 0.0
      %356 = vmatpush1.msra.mxu0 %v282
      %357 = vmatprep.subr.mxu0 0.0
      %358 = vmatpush1.msra.mxu0 %v283
      %359 = vmatprep.subr.mxu0 0.0
      %360 = vmatpush1.msra.mxu0 %v284
      %361 = vmatprep.subr.mxu0 0.0
      %362 = vmatpush1.msra.mxu0 %v285
      %363 = vmatprep.subr.mxu0 0.0
      %364 = vmatpush1.msra.mxu0 %v286
      %365 = vmatprep.subr.mxu0 0.0
      %366 = vmatpush1.msra.mxu0 %v287
      %367 = vmatprep.subr.mxu0 0.0
      %368 = vmatpush1.msra.mxu0 %v288
      %369 = vmatprep.subr.mxu0 0.0
      %370 = vmatpush1.msra.mxu0 %v289
      %371 = vmatprep.subr.mxu0 0.0
      %372 = vmatpush1.msra.mxu0 %v290
      %373 = vmatprep.subr.mxu0 0.0
      %374 = vmatpush1.msra.mxu0 %v291
      %375 = vmatprep.subr.mxu0 0.0
      %376 = vmatpush1.msra.mxu0 %v292
      %377 = vmatprep.subr.mxu0 0.0
      %378 = vmatpush1.msra.mxu0 %v293
      %379 = vmatprep.subr.mxu0 0.0
      %380 = vmatpush1.msra.mxu0 %v294
      %381 = vmatprep.subr.mxu0 0.0
      %382 = vmatpush1.msra.mxu0 %v295
      %383 = vmatprep.subr.mxu0 0.0
      %384 = vmatpush1.msra.mxu0 %v296
      %385 = vmatprep.subr.mxu0 0.0
      %386 = vmatpush1.msra.mxu0 %v297
      %387 = vmatprep.subr.mxu0 0.0
      %388 = vmatpush1.msra.mxu0 %v298
      %389 = vmatprep.subr.mxu0 0.0
      %390 = vmatpush1.msra.mxu0 %v299
      %391 = vmatprep.subr.mxu0 0.0
      %392 = vmatpush1.msra.mxu0 %v300
      %393 = vmatprep.subr.mxu0 0.0
      %394 = vmatpush1.msra.mxu0 %v301
      %395 = vmatprep.subr.mxu0 0.0
      %396 = vmatpush1.msra.mxu0 %v302
      %397 = vmatprep.subr.mxu0 0.0
      %398 = vmatpush1.msra.mxu0 %v303
      %399 = vmatprep.subr.mxu0 0.0
      %400 = vmatpush1.msra.mxu0 %v304
      %401 = vmatprep.subr.mxu0 0.0
      %402 = vmatpush1.msra.mxu0 %v305
      %403 = vmatprep.subr.mxu0 0.0
      %404 = vmatpush1.msra.mxu0 %v306
      %405 = vmatprep.subr.mxu0 0.0
      %406 = vmatpush1.msra.mxu0 %v307
      %407 = vmatprep.subr.mxu0 0.0
      %408 = vmatpush1.msra.mxu0 %v308
      %409 = vmatprep.subr.mxu0 0.0
      %410 = vmatpush1.msra.mxu0 %v309
      %411 = vmatprep.subr.mxu0 0.0
      %412 = vmatpush1.msra.mxu0 %v310
      %413 = vmatprep.subr.mxu0 0.0
      %414 = vmatpush1.msra.mxu0 %v311
      %415 = vmatprep.mubr.f32.mxu0 %v277
      %416 = vmatmul.mubr.f32.gmra.mrb[0].mxu0 %v276
      %v417 = vpop.f32.mrb[0].mxu0
      %v418 = vadd.f32 %v349, %v417
      %v419 = vpop.f32.mrb[0].mxu0
      %420 = vdwg.mxu0
      %421 = vmatprep.subr.mxu0 0.0
      %422 = vmatpush1.msra.mxu0 %v312
      %423 = vmatprep.subr.mxu0 0.0
      %424 = vmatpush1.msra.mxu0 %v313
      %425 = vmatprep.subr.mxu0 0.0
      %426 = vmatpush1.msra.mxu0 %v314
      %427 = vmatprep.subr.mxu0 0.0
      %428 = vmatpush1.msra.mxu0 %v315
      %429 = vmatprep.subr.mxu0 0.0
      %430 = vmatpush1.msra.mxu0 %v316
      %431 = vmatprep.subr.mxu0 0.0
      %432 = vmatpush1.msra.mxu0 %v317
      %433 = vmatprep.subr.mxu0 0.0
      %434 = vmatpush1.msra.mxu0 %v318
      %435 = vmatprep.subr.mxu0 0.0
      %436 = vmatpush1.msra.mxu0 %v319
      %437 = vmatprep.subr.mxu0 0.0
      %438 = vmatpush1.msra.mxu0 %v320
      %439 = vmatprep.subr.mxu0 0.0
      %440 = vmatpush1.msra.mxu0 %v321
      %441 = vmatprep.subr.mxu0 0.0
      %442 = vmatpush1.msra.mxu0 %v322
      %443 = vmatprep.subr.mxu0 0.0
      %444 = vmatpush1.msra.mxu0 %v323
      %445 = vmatprep.subr.mxu0 0.0
      %446 = vmatpush1.msra.mxu0 %v324
      %447 = vmatprep.subr.mxu0 0.0
      %448 = vmatpush1.msra.mxu0 %v325
      %449 = vmatprep.subr.mxu0 0.0
      %450 = vmatpush1.msra.mxu0 %v326
      %451 = vmatprep.subr.mxu0 0.0
      %452 = vmatpush1.msra.mxu0 %v327
      %453 = vmatprep.subr.mxu0 0.0
      %454 = vmatpush1.msra.mxu0 %v328
      %455 = vmatprep.subr.mxu0 0.0
      %456 = vmatpush1.msra.mxu0 %v329
      %457 = vmatprep.subr.mxu0 0.0
      %458 = vmatpush1.msra.mxu0 %v330
      %459 = vmatprep.subr.mxu0 0.0
      %460 = vmatpush1.msra.mxu0 %v331
      %461 = vmatprep.subr.mxu0 0.0
      %462 = vmatpush1.msra.mxu0 %v332
      %463 = vmatprep.subr.mxu0 0.0
      %464 = vmatpush1.msra.mxu0 %v333
      %465 = vmatprep.subr.mxu0 0.0
      %466 = vmatpush1.msra.mxu0 %v334
      %467 = vmatprep.subr.mxu0 0.0
      %468 = vmatpush1.msra.mxu0 %v335
      %469 = vmatprep.subr.mxu0 0.0
      %470 = vmatpush1.msra.mxu0 %v336
      %471 = vmatprep.subr.mxu0 0.0
      %472 = vmatpush1.msra.mxu0 %v337
      %473 = vmatprep.subr.mxu0 0.0
      %474 = vmatpush1.msra.mxu0 %v338
      %475 = vmatprep.subr.mxu0 0.0
      %476 = vmatpush1.msra.mxu0 %v339
      %477 = vmatprep.subr.mxu0 0.0
      %478 = vmatpush1.msra.mxu0 %v340
      %479 = vmatprep.subr.mxu0 0.0
      %480 = vmatpush1.msra.mxu0 %v341
      %481 = vmatprep.subr.mxu0 0.0
      %482 = vmatpush1.msra.mxu0 %v342
      %483 = vmatprep.subr.mxu0 0.0
      %484 = vmatpush1.msra.mxu0 %v343
      %485 = vmatprep.mubr.f32.mxu0 %v279
      %486 = vmatmul.mubr.f32.gmra.mrb[0].mxu0 %v278
      %v487 = vpop.f32.mrb[0].mxu0
      %v488 = vadd.f32 %v418, %v487
      %v489 = vpop.f32.mrb[0].mxu0
      %490 = vdwg.mxu0
      %491 = vst [vmem:[#allocation9] sm:$0xff] %v488
    $region41: #{tpu_custom_call.1} parent=1 // pred_fallthru
      _
    // Predicated region
    $region42: #{tpu_custom_call.1} parent=1 // pred_check
      _
    $region43: #{tpu_custom_call.1} parent=1 // pred_check_branch
      %493 = sbr.rel (0) target = $region45
    $region44: #{tpu_custom_call.1} parent=1 // pred_region
      %s495 = ssub.s32 128, 128
      %496 = vsyncadd [#allocation5], %s495
      %s498 = sshll.u32 [#allocation9], 4
      %s499 = int_to_ptr.vmem [resolvable:$true] %s498
      %501 = dma.vmem_to_hbm [thread:$0]  %s499, 128, %s5, [#allocation5]
    $region45: #{tpu_custom_call.1} parent=1 // pred_fallthru
      _
    // Predicated region
    $region46: #{tpu_custom_call.1} parent=1 // pred_check
      _
    $region47: #{tpu_custom_call.1} parent=1 // pred_check_branch
      %503 = sbr.rel (0) target = $region49
    $region48: #{tpu_custom_call.1} parent=1 // pred_region
      %504 = dma.done [#allocation5], 128
    $region49: #{tpu_custom_call.1} parent=1 // pred_fallthru
      _
    %505 = vsyncpa [#allocation4], 1
    %506 = vsyncpa [#allocation7], 1
    %507 = vsyncpa [#allocation5], 1

</llo_original>
